<compile_context>
chip_gen: v7x
topology: tpu7x:2x2x1
jax: 0.10.0
libtpu: 0.0.40
codegen_flags: <defaults>
</compile_context>

<pallas_src>
import jax
import jax.numpy as jnp
from jax.experimental import pallas as pl
from jax.experimental.pallas import tpu as pltpu

# xlm-roberta-base tokenizer constants (deterministic "init")
BOS_TOKEN_ID = 0   # <s>
EOS_TOKEN_ID = 2   # </s>  (sep token)
PAD_TOKEN_ID = 1   # <pad>
VOCAB_SIZE = 250002

MAX_SEQ_LEN = 128          # module default is 256; 128 keeps the demo small
ADD_SPECIAL_TOKENS = True


def _hf_transform_kernel(tokens_ref, lens_ref, out_ref):
    """Truncate + add special tokens + pad, one (bb, S) batch tile.

    tokens_ref: [bb, W]    int32  raw (pre-tokenized) ids, W = min(L, ~S)
    lens_ref:   [1, 1, bb] int32  lane-dense valid-token counts per row
    out_ref:    [bb, S]    int32  final input_ids (padded with PAD_TOKEN_ID)
    """
    toks = tokens_ref[...]                   # [bb, W]
    bb, S = out_ref.shape
    W = toks.shape[1]

    # Lengths arrive lane-dense; one XLU relayout gives the (bb, 1) column
    # needed for the per-row broadcasts below (XLU is otherwise idle here).
    lens_col = jnp.transpose(lens_ref[...].reshape(1, bb))   # (bb, 1)
    lens_col = jnp.maximum(lens_col, 0)      # clamp negative lengths -> 0

    # Window the raw tokens to exactly S lanes (truncate or right-pad).
    if W > S:                                # only when S % 128 != 0
        win = toks[:, :S]
    elif W < S:                              # raw buffer narrower than S:
        # right-pad with PAD so the special-token shift below is one XLU roll
        win = jnp.concatenate(
            [toks, jnp.full((bb, S - W), PAD_TOKEN_ID, jnp.int32)], axis=1)
    else:
        win = toks

    col = jax.lax.broadcasted_iota(jnp.int32, (bb, S), 1)    # [bb, S]

    if ADD_SPECIAL_TOKENS:
        # content budget: 2 slots reserved for <s>/</s>; also clamp to the raw
        # buffer width W (lens[b] may exceed it).
        budget = min(W, S - 2)
        eff = jnp.minimum(lens_col, jnp.int32(budget))       # (bb, 1)

        # XLU lane roll: col j holds raw token j-1.  roll is circular, so
        # win[:, S-1] wraps into col 0 — that value is ALWAYS overwritten by
        # the BOS branch below (keep the col == 0 branch outermost!).
        shifted = pltpu.roll(win, shift=1, axis=1)

        out = jnp.where(
            col == 0,
            jnp.int32(BOS_TOKEN_ID),
            jnp.where(
                col <= eff,
                shifted,
                jnp.where(col == eff + 1,
                          jnp.int32(EOS_TOKEN_ID),
                          jnp.int32(PAD_TOKEN_ID)),
            ),
        )
    else:
        budget = min(W, S)
        eff = jnp.minimum(lens_col, jnp.int32(budget))
        out = jnp.where(col < eff, win, jnp.int32(PAD_TOKEN_ID))

    out_ref[...] = out


def hf_transform(raw_token_ids, lengths, max_seq_len=MAX_SEQ_LEN, block_b=4096):
    """JAX wrapper: shape plumbing + pallas_call (no HBM-side token pad/copy).

    raw_token_ids: [B, L] int32, pre-tokenized ids (tail beyond `lengths` ignored)
    lengths:       [B]    int32, valid token count per row (negatives -> 0)
    block_b:       requested batch-tile height (auto-capped by VMEM budget and
                   split so the grid has >= 2 tiles for megacore sharding)
    returns:       [B, max_seq_len] int32 input_ids
    """
    B, L = raw_token_ids.shape
    S = int(max_seq_len)
    raw = raw_token_ids.astype(jnp.int32)

    # Token window: only the first min(L, round_up(S,128)) raw columns can ever
    # reach the output; anything past that would be wasted HBM traffic.  Width
    # is a multiple of 128 (lane-dense DMA) or the full row width L.
    s_pad = ((S + 127) // 128) * 128
    tok_w = min(L, s_pad)

    # Batch tile: multiple of 8 (int32 sublane); at least 2 grid tiles when
    # B > 8 so dimension_semantics=("parallel",) can shard across v7x's two
    # TensorCores; capped so the double-buffered in+out tiles stay well under
    # v5e's 16 MiB scoped-VMEM default (v6e: 32/128 MiB, v7x: 32 of 64 per TC).
    per_row_bytes = 2 * 4 * (tok_w + S) + 8            # 2-deep in/out (+ lens)
    vmem_budget = 12 * 1024 * 1024
    bb_cap = max(8, (vmem_budget // per_row_bytes) // 8 * 8)
    if B <= 8:
        bb = B                                         # single tile == full dim
    else:
        two_tiles = ((-(-B // 2) + 7) // 8) * 8        # ceil(B/2), 8-aligned
        bb = max(8, (min(block_b, bb_cap, two_tiles) // 8) * 8)
    grid_b = pl.cdiv(B, bb)

    # Lengths go in lane-dense: [grid_b, 1, bb] so each grid step DMAs one
    # contiguous (1, 1, bb) row tile instead of a sublane-scattered (bb, 1)
    # column tile.  (Tiny wrapper-side pad/reshape of B ints only.)
    lens_flat = lengths.astype(jnp.int32).reshape(-1)
    b_pad = grid_b * bb
    if b_pad != B:
        lens_flat = jnp.pad(lens_flat, (0, b_pad - B))
    lens3d = lens_flat.reshape(grid_b, 1, bb)

    return pl.pallas_call(
        _hf_transform_kernel,
        out_shape=jax.ShapeDtypeStruct((B, S), jnp.int32),
        grid_spec=pltpu.PrefetchScalarGridSpec(
            num_scalar_prefetch=0,
            grid=(grid_b,),
            in_specs=[
                pl.BlockSpec((bb, tok_w), lambda i: (i, 0)),
                pl.BlockSpec((1, 1, bb), lambda i: (i, 0, 0)),
            ],
            out_specs=pl.BlockSpec((bb, S), lambda i: (i, 0)),
        ),
        compiler_params=pltpu.CompilerParams(
            # batch tiles are independent -> shard across TCs (v7x megacore)
            dimension_semantics=("parallel",),
        ),
    )(raw, lens3d)


def _reference(raw_token_ids, lengths, max_seq_len=MAX_SEQ_LEN):
    """Pure-numpy reference mirroring HF tokenizer truncation semantics."""
    import numpy as np
    raw = np.asarray(raw_token_ids)
    lengths = np.asarray(lengths)
    B, L = raw.shape
    out = np.full((B, max_seq_len), PAD_TOKEN_ID, dtype=np.int32)
    for b in range(B):
        eff = max(0, min(int(lengths[b]), L, max_seq_len - 2))
        ids = [BOS_TOKEN_ID] + list(raw[b, :eff]) + [EOS_TOKEN_ID]
        out[b, :len(ids)] = np.asarray(ids, dtype=np.int32)
    return out


if __name__ == "__main__":
    import numpy as np

    # --- case 1: raw buffer wider than max_seq_len (truncation + direct
    #             lane-dense HBM window), S = 128 ---------------------------
    key = jax.random.PRNGKey(0)
    B, L_RAW = 512, 192
    k_tok, k_len = jax.random.split(key)
    raw_ids = jax.random.randint(k_tok, (B, L_RAW), 3, VOCAB_SIZE, dtype=jnp.int32)
    lengths = jax.random.randint(k_len, (B,), 0, L_RAW + 16, dtype=jnp.int32)
    lengths = lengths.at[0].set(0)                  # empty text
    lengths = lengths.at[1].set(5)                  # short text
    lengths = lengths.at[2].set(MAX_SEQ_LEN - 2)    # exactly fills the budget
    lengths = lengths.at[3].set(L_RAW)              # full raw buffer, truncated
    lengths = lengths.at[4].set(-7)                 # negative -> treated as 0
    ref = _reference(np.asarray(raw_ids), np.asarray(lengths))

    # default block_b -> bb=256, 2 tiles (megacore path)
    out = jax.block_until_ready(hf_transform(raw_ids, lengths))
    np.testing.assert_array_equal(np.asarray(out), ref)

    # small block_b -> bb=128, 4 tiles (pipelined multi-tile path)
    out = jax.block_until_ready(hf_transform(raw_ids, lengths, block_b=128))
    np.testing.assert_array_equal(np.asarray(out), ref)

    # --- case 2: raw buffer NARROWER than max_seq_len (in-kernel right-pad
    #             + roll), S = 256 (the module's real default) ---------------
    B2, L2, S2 = 256, 64, 256
    k_tok2, k_len2 = jax.random.split(jax.random.PRNGKey(1))
    raw2 = jax.random.randint(k_tok2, (B2, L2), 3, VOCAB_SIZE, dtype=jnp.int32)
    len2 = jax.random.randint(k_len2, (B2,), 0, L2 + 8, dtype=jnp.int32)
    len2 = len2.at[0].set(0)
    len2 = len2.at[1].set(L2)
    ref2 = _reference(np.asarray(raw2), np.asarray(len2), max_seq_len=S2)

    out2 = jax.block_until_ready(hf_transform(raw2, len2, max_seq_len=S2))
    np.testing.assert_array_equal(np.asarray(out2), ref2)

    print("KERNEL_OK")
</pallas_src>

<mosaic_0001>
module attributes {stable_mosaic.version = 11 : i64} {
  func.func @_hf_transform_kernel(%arg0: i32, %arg1: memref<256x128xi32, #tpu.memory_space<vmem>>, %arg2: memref<1x1x256xi32, #tpu.memory_space<vmem>>, %arg3: memref<256x128xi32, #tpu.memory_space<vmem>>) attributes {dimension_semantics = [#tpu.dimension_semantics<parallel>], iteration_bounds = array<i64: 2>, scalar_prefetch = 0 : i64, scratch_operands = 0 : i64, tpu.core_type = #tpu.core_type<tc>, window_params = [{transform_indices = @transform_0, window_bounds = array<i64: 256, 128>}, {transform_indices = @transform_1, window_bounds = array<i64: 1, 1, 256>}, {transform_indices = @transform_2, window_bounds = array<i64: 256, 128>}]} {
    %c0 = arith.constant 0 : index
    %c0_0 = arith.constant 0 : index
    %0 = vector.load %arg1[%c0, %c0_0] : memref<256x128xi32, #tpu.memory_space<vmem>>, vector<256x128xi32>
    %c0_1 = arith.constant 0 : index
    %c0_2 = arith.constant 0 : index
    %c0_3 = arith.constant 0 : index
    %1 = vector.load %arg2[%c0_1, %c0_2, %c0_3] : memref<1x1x256xi32, #tpu.memory_space<vmem>>, vector<1x1x256xi32>
    %2 = vector.shape_cast %1 : vector<1x1x256xi32> to vector<1x256xi32>
    %3 = tpu.transpose %2, [1, 0] : vector<1x256xi32> -> vector<256x1xi32>
    %c0_i32 = arith.constant 0 : i32
    %4 = vector.broadcast %c0_i32 : i32 to vector<256x1xi32>
    %5 = arith.maxsi %3, %4 : vector<256x1xi32>
    %6 = tpu.iota {dimensions = array<i32: 1>} : vector<256x128xi32>
    %c126_i32 = arith.constant 126 : i32
    %7 = vector.broadcast %c126_i32 : i32 to vector<256x1xi32>
    %8 = arith.minsi %5, %7 : vector<256x1xi32>
    %c1_i32 = arith.constant 1 : i32
    %9 = tpu.dynamic_rotate %0 by %c1_i32 dim 1 : vector<256x128xi32>, i32 -> vector<256x128xi32>
    %c0_i32_4 = arith.constant 0 : i32
    %10 = vector.broadcast %c0_i32_4 : i32 to vector<256x128xi32>
    %11 = arith.cmpi eq, %6, %10 : vector<256x128xi32>
    %12 = vector.broadcast %8 : vector<256x1xi32> to vector<256x128xi32>
    %13 = arith.cmpi sle, %6, %12 : vector<256x128xi32>
    %c1_i32_5 = arith.constant 1 : i32
    %14 = vector.broadcast %c1_i32_5 : i32 to vector<256x1xi32>
    %15 = arith.addi %8, %14 : vector<256x1xi32>
    %16 = vector.broadcast %15 : vector<256x1xi32> to vector<256x128xi32>
    %17 = arith.cmpi eq, %6, %16 : vector<256x128xi32>
    %c2_i32 = arith.constant 2 : i32
    %c1_i32_6 = arith.constant 1 : i32
    %18 = vector.broadcast %c2_i32 : i32 to vector<256x128xi32>
    %19 = vector.broadcast %c1_i32_6 : i32 to vector<256x128xi32>
    %20 = arith.select %17, %18, %19 : vector<256x128xi1>, vector<256x128xi32>
    %21 = arith.select %13, %9, %20 : vector<256x128xi1>, vector<256x128xi32>
    %c0_i32_7 = arith.constant 0 : i32
    %22 = vector.broadcast %c0_i32_7 : i32 to vector<256x128xi32>
    %23 = arith.select %11, %22, %21 : vector<256x128xi1>, vector<256x128xi32>
    %c0_8 = arith.constant 0 : index
    %c0_9 = arith.constant 0 : index
    %24 = vector.load %arg3[%c0_8, %c0_9] : memref<256x128xi32, #tpu.memory_space<vmem>>, vector<256x128xi32>
    tpu.vector_store %arg3[%c0_8, %c0_9], %23 {strides = array<i32>} : memref<256x128xi32, #tpu.memory_space<vmem>>, vector<256x128xi32>,
    return
  }
  func.func @transform_0(%arg0: i32) -> (i32, i32) {
    %c0_i32 = arith.constant 0 : i32
    %c0_i32_0 = arith.constant 0 : i32
    return %arg0, %c0_i32 : i32, i32
  }
  func.func @transform_1(%arg0: i32) -> (i32, i32, i32) {
    %c0_i32 = arith.constant 0 : i32
    %c0_i32_0 = arith.constant 0 : i32
    %c0_i32_1 = arith.constant 0 : i32
    return %arg0, %c0_i32, %c0_i32_0 : i32, i32, i32
  }
  func.func @transform_2(%arg0: i32) -> (i32, i32) {
    %c0_i32 = arith.constant 0 : i32
    %c0_i32_0 = arith.constant 0 : i32
    return %arg0, %c0_i32 : i32, i32
  }
}

</mosaic_0001>

<llo_original>
// kernel: tpu_custom_call.1
$region0: #{tpu_custom_call.1}
  #allocation0 [shape = 'u32[]', space=smem, size = 0x4, offset = 0x4, fixed_abs, tag = 'smem constant byte address 0x4 - core index']
  #allocation1 [shape = 'u32[144,128]{1,0:T(1,128)}', space=vmem, size = 0x12000, scoped, tag = 'internal scratch']
  %s0 = inlined_call_operand.vmem [shape: s32[512,192], index: 0, kind: input, shape index: {}]
  %s1 = inlined_call_operand.vmem [shape: s32[2,1,256], index: 1, kind: input, shape index: {}]
  %s2 = inlined_call_operand.hbm [shape: s32[512,128], index: 2, kind: output, shape index: {}]
  %s3 = sld [smem:[#allocation0]]
  $region79: #{tpu_custom_call.1} parent=0
    _
  %s5 = ssub.s32 1, %s3
  %s6 = scalar_select 0, %s5, %s3
  $region1: #{tpu_custom_call.1} parent=0
    #allocation2 [shape = 'u8[262144]{0}', space=vmem, size = 0x40000, scoped, tag = 'input window, operand 0']
    #allocation3 [shape = 'u8[262144]{0}', space=vmem, size = 0x40000, scoped, tag = 'output window, operand 0']
    #allocation4 [shape = 's32[2]{0}', space=sflag, size = 0x8, scoped, tag = 'scoped memory for tpu_custom_call.1']
    %7 = vsyncpa [#allocation4], 0
    %s8 = scalar_lea.sflag [#allocation4], 1
    %9 = vsyncpa %s8, 0
    loop: start=0, step=1, limit=4
    $region2: #{tpu_custom_call.1} parent=1 // loop_pre_header
      _
    $region3: #{tpu_custom_call.1} parent=1 // loop_header
      %s11 = sphi 0, %s15
      %p12 = scmp.ge.s32.totalorder %s11, 4
      %s21 = sphi 0, %s23
      %s24 = sphi 0, %s21
      %s25 = sphi 0, %s24
      %s41 = sphi 0, %s25
      %s47 = sphi 0, %s49
      %s50 = sphi 0, %s47
      %s51 = sphi 0, %s50
      %s67 = sphi 0, %s51
      %s73 = sphi 0, %s75
      %s76 = sphi 0, %s73
      %s77 = sphi 0, %s76
      %s93 = sphi 0, %s77
    $region4: #{tpu_custom_call.1} parent=1 // loop_header_branch
      %14 = sbr.rel (%p12) target = $region8
    $region5: #{tpu_custom_call.1} parent=1 // loop_body
      %s16 = ssub.s32 %s11, 1
      %s17 = ssub.s32 %s11, 2
      %s18 = sadd.s32 %s11, 1
      %s19 = ssub.s32 %s11, %s18
      %p20 = scmp.eq.s32.totalorder %s19, 0
      %s22 = sadd.s32 %s21, 1
      %s23 = scalar_select %p20, %s21, %s22
      %p26 = pneg %p20
      %p27 = scmp.eq.s32.totalorder %s11, 1
      %p28 = por %p26, %p27
      %p29 = scmp.ne.s32.totalorder %s21, %s24
      %p30 = scmp.eq.s32.totalorder %s11, 0
      %p31 = por %p29, %p30
      %p32 = scmp.ne.s32.totalorder %s21, %s24
      %p33 = scmp.eq.s32.totalorder %s16, 1
      %p34 = por %p32, %p33
      %p35 = scmp.ne.s32.totalorder %s24, %s25
      %p36 = scmp.eq.s32.totalorder %s16, 0
      %p37 = por %p35, %p36
      %p38 = scmp.ne.s32.totalorder %s24, %s25
      %p39 = scmp.eq.s32.totalorder %s17, 1
      %p40 = por %p38, %p39
      %p42 = scmp.ne.s32.totalorder %s25, %s41
      %p43 = scmp.eq.s32.totalorder %s17, 0
      %p44 = por %p42, %p43
      %s45 = ssub.s32 %s11, %s18
      %p46 = scmp.eq.s32.totalorder %s45, 0
      %s48 = sadd.s32 %s47, 1
      %s49 = scalar_select %p46, %s47, %s48
      %p52 = pneg %p46
      %p53 = scmp.eq.s32.totalorder %s11, 1
      %p54 = por %p52, %p53
      %p55 = scmp.ne.s32.totalorder %s47, %s50
      %p56 = scmp.eq.s32.totalorder %s11, 0
      %p57 = por %p55, %p56
      %p58 = scmp.ne.s32.totalorder %s47, %s50
      %p59 = scmp.eq.s32.totalorder %s16, 1
      %p60 = por %p58, %p59
      %p61 = scmp.ne.s32.totalorder %s50, %s51
      %p62 = scmp.eq.s32.totalorder %s16, 0
      %p63 = por %p61, %p62
      %p64 = scmp.ne.s32.totalorder %s50, %s51
      %p65 = scmp.eq.s32.totalorder %s17, 1
      %p66 = por %p64, %p65
      %p68 = scmp.ne.s32.totalorder %s51, %s67
      %p69 = scmp.eq.s32.totalorder %s17, 0
      %p70 = por %p68, %p69
      %s71 = ssub.s32 %s11, %s18
      %p72 = scmp.eq.s32.totalorder %s71, 0
      %s74 = sadd.s32 %s73, 1
      %s75 = scalar_select %p72, %s73, %s74
      %p78 = pneg %p72
      %p79 = scmp.eq.s32.totalorder %s11, 1
      %p80 = por %p78, %p79
      %p81 = scmp.ne.s32.totalorder %s73, %s76
      %p82 = scmp.eq.s32.totalorder %s11, 0
      %p83 = por %p81, %p82
      %p84 = scmp.ne.s32.totalorder %s73, %s76
      %p85 = scmp.eq.s32.totalorder %s16, 1
      %p86 = por %p84, %p85
      %p87 = scmp.ne.s32.totalorder %s76, %s77
      %p88 = scmp.eq.s32.totalorder %s16, 0
      %p89 = por %p87, %p88
      %p90 = scmp.ne.s32.totalorder %s76, %s77
      %p91 = scmp.eq.s32.totalorder %s17, 1
      %p92 = por %p90, %p91
      %p94 = scmp.ne.s32.totalorder %s77, %s93
      %p95 = scmp.eq.s32.totalorder %s17, 0
      %p96 = por %p94, %p95
      %p97 = scmp.le.s32.totalorder 1, %s11
      %p98 = scmp.lt.s32.totalorder %s11, 3
      %p99 = pnand %p97, %p98
      %p100 = pneg %p99
      // Predicated region
      $region9: #{tpu_custom_call.1} parent=5 // pred_check
        _
      $region10: #{tpu_custom_call.1} parent=5 // pred_check_branch
        %102 = sbr.rel (%p99) target = $region12
      $region11: #{tpu_custom_call.1} parent=5 // pred_region
        %s103 = ssub.s32 %s11, 1
      $region12: #{tpu_custom_call.1} parent=5 // pred_fallthru
        _
      %p104 = scmp.lt.s32.totalorder %s11, 2
      // Predicated region
      $region13: #{tpu_custom_call.1} parent=5 // pred_check
        %p105 = pneg %p104
      $region14: #{tpu_custom_call.1} parent=5 // pred_check_branch
        %107 = sbr.rel (%p105) target = $region16
      $region15: #{tpu_custom_call.1} parent=5 // pred_region
        // Predicated region
        $region17: #{tpu_custom_call.1} parent=15 // pred_check
          %p108 = pneg %p31
        $region18: #{tpu_custom_call.1} parent=15 // pred_check_branch
          %110 = sbr.rel (%p108) target = $region20
        $region19: #{tpu_custom_call.1} parent=15 // pred_region
          %s111 = sand.u32 %s21, 1
          %s112 = sand.u32 %s21, 1
          %s113 = smul.addr %s112, 256
          %s114 = scalar_lea.vmem [#allocation2], %s113
          %s115 = smul.u32 32, %s11
          %s116 = smul.addr %s115, 2
          %s117 = smul.addr %s116, 8
          %s118 = scalar_lea.vmem %s0, %s117
          // Predicated region
          $region21: #{tpu_custom_call.1} parent=19 // pred_check
            _
          $region22: #{tpu_custom_call.1} parent=19 // pred_check_branch
            %120 = sbr.rel (0) target = $region24
          $region23: #{tpu_custom_call.1} parent=19 // pred_region
            // Predicated region
            $region25: #{tpu_custom_call.1} parent=23 // pred_check
              _
            $region26: #{tpu_custom_call.1} parent=23 // pred_check_branch
              %122 = sbr.rel (0) target = $region28
            $region27: #{tpu_custom_call.1} parent=23 // pred_region
              // Predicated region
              $region40: #{tpu_custom_call.1} parent=27 // pred_check
                _
              $region41: #{tpu_custom_call.1} parent=27 // pred_check_branch
                %199 = sbr.rel (0) target = $region43
              $region42: #{tpu_custom_call.1} parent=27 // pred_region
                loop: start=0, step=1, limit=1
                $region44: #{tpu_custom_call.1} parent=42 // loop_pre_header
                  _
                $region45: #{tpu_custom_call.1} parent=42 // loop_header
                  %s201 = sphi 0, %s205
                  %p202 = scmp.ge.s32.totalorder %s201, 1
                  %s206 = sphi %s118, %s118
                  %s207 = sphi %s114, %s114
                $region46: #{tpu_custom_call.1} parent=42 // loop_header_branch
                  %204 = sbr.rel (%p202) target = $region50
                $region47: #{tpu_custom_call.1} parent=42 // loop_body
                  %v208 = vld [vmem:[%s206] sm:$0xff]
                  %209 = vst [vmem:[%s207] sm:$0xff] %v208
                  %v210 = vld [vmem:[%s206 + $0x10] sm:$0xff]
                  %211 = vst [vmem:[%s207 + $0x8] sm:$0xff] %v210
                  %v212 = vld [vmem:[%s206 + $0x20] sm:$0xff]
                  %213 = vst [vmem:[%s207 + $0x10] sm:$0xff] %v212
                  %v214 = vld [vmem:[%s206 + $0x30] sm:$0xff]
                  %215 = vst [vmem:[%s207 + $0x18] sm:$0xff] %v214
                  %v216 = vld [vmem:[%s206 + $0x40] sm:$0xff]
                  %217 = vst [vmem:[%s207 + $0x20] sm:$0xff] %v216
                  %v218 = vld [vmem:[%s206 + $0x50] sm:$0xff]
                  %219 = vst [vmem:[%s207 + $0x28] sm:$0xff] %v218
                  %v220 = vld [vmem:[%s206 + $0x60] sm:$0xff]
                  %221 = vst [vmem:[%s207 + $0x30] sm:$0xff] %v220
                  %v222 = vld [vmem:[%s206 + $0x70] sm:$0xff]
                  %223 = vst [vmem:[%s207 + $0x38] sm:$0xff] %v222
                  %v224 = vld [vmem:[%s206 + $0x80] sm:$0xff]
                  %225 = vst [vmem:[%s207 + $0x40] sm:$0xff] %v224
                  %v226 = vld [vmem:[%s206 + $0x90] sm:$0xff]
                  %227 = vst [vmem:[%s207 + $0x48] sm:$0xff] %v226
                  %v228 = vld [vmem:[%s206 + $0xa0] sm:$0xff]
                  %229 = vst [vmem:[%s207 + $0x50] sm:$0xff] %v228
                  %v230 = vld [vmem:[%s206 + $0xb0] sm:$0xff]
                  %231 = vst [vmem:[%s207 + $0x58] sm:$0xff] %v230
                  %v232 = vld [vmem:[%s206 + $0xc0] sm:$0xff]
                  %233 = vst [vmem:[%s207 + $0x60] sm:$0xff] %v232
                  %v234 = vld [vmem:[%s206 + $0xd0] sm:$0xff]
                  %235 = vst [vmem:[%s207 + $0x68] sm:$0xff] %v234
                  %v236 = vld [vmem:[%s206 + $0xe0] sm:$0xff]
                  %237 = vst [vmem:[%s207 + $0x70] sm:$0xff] %v236
                  %v238 = vld [vmem:[%s206 + $0xf0] sm:$0xff]
                  %239 = vst [vmem:[%s207 + $0x78] sm:$0xff] %v238
                  %v240 = vld [vmem:[%s206 + $0x100] sm:$0xff]
                  %241 = vst [vmem:[%s207 + $0x80] sm:$0xff] %v240
                  %v242 = vld [vmem:[%s206 + $0x110] sm:$0xff]
                  %243 = vst [vmem:[%s207 + $0x88] sm:$0xff] %v242
                  %v244 = vld [vmem:[%s206 + $0x120] sm:$0xff]
                  %245 = vst [vmem:[%s207 + $0x90] sm:$0xff] %v244
                  %v246 = vld [vmem:[%s206 + $0x130] sm:$0xff]
                  %247 = vst [vmem:[%s207 + $0x98] sm:$0xff] %v246
                  %v248 = vld [vmem:[%s206 + $0x140] sm:$0xff]
                  %249 = vst [vmem:[%s207 + $0xa0] sm:$0xff] %v248
                  %v250 = vld [vmem:[%s206 + $0x150] sm:$0xff]
                  %251 = vst [vmem:[%s207 + $0xa8] sm:$0xff] %v250
                  %v252 = vld [vmem:[%s206 + $0x160] sm:$0xff]
                  %253 = vst [vmem:[%s207 + $0xb0] sm:$0xff] %v252
                  %v254 = vld [vmem:[%s206 + $0x170] sm:$0xff]
                  %255 = vst [vmem:[%s207 + $0xb8] sm:$0xff] %v254
                  %v256 = vld [vmem:[%s206 + $0x180] sm:$0xff]
                  %257 = vst [vmem:[%s207 + $0xc0] sm:$0xff] %v256
                  %v258 = vld [vmem:[%s206 + $0x190] sm:$0xff]
                  %259 = vst [vmem:[%s207 + $0xc8] sm:$0xff] %v258
                  %v260 = vld [vmem:[%s206 + $0x1a0] sm:$0xff]
                  %261 = vst [vmem:[%s207 + $0xd0] sm:$0xff] %v260
                  %v262 = vld [vmem:[%s206 + $0x1b0] sm:$0xff]
                  %263 = vst [vmem:[%s207 + $0xd8] sm:$0xff] %v262
                  %v264 = vld [vmem:[%s206 + $0x1c0] sm:$0xff]
                  %265 = vst [vmem:[%s207 + $0xe0] sm:$0xff] %v264
                  %v266 = vld [vmem:[%s206 + $0x1d0] sm:$0xff]
                  %267 = vst [vmem:[%s207 + $0xe8] sm:$0xff] %v266
                  %v268 = vld [vmem:[%s206 + $0x1e0] sm:$0xff]
                  %269 = vst [vmem:[%s207 + $0xf0] sm:$0xff] %v268
                  %v270 = vld [vmem:[%s206 + $0x1f0] sm:$0xff]
                  %271 = vst [vmem:[%s207 + $0xf8] sm:$0xff] %v270
                $region48: #{tpu_custom_call.1} parent=42 // loop_footer
                  %s205 = sadd.s32 1, %s201
                $region49: #{tpu_custom_call.1} parent=42 // loop_footer_branch
                  %200 = sbr.rel target = $region45
                $region50: #{tpu_custom_call.1} parent=42 // loop_exit
                  _
              $region43: #{tpu_custom_call.1} parent=27 // pred_fallthru
                _
              // Predicated region
              $region51: #{tpu_custom_call.1} parent=27 // pred_check
                _
              $region52: #{tpu_custom_call.1} parent=27 // pred_check_branch
                %273 = sbr.rel target = $region54
              $region53: #{tpu_custom_call.1} parent=27 // pred_region
                _
              $region54: #{tpu_custom_call.1} parent=27 // pred_fallthru
                _
            $region28: #{tpu_custom_call.1} parent=23 // pred_fallthru
              _
            // Predicated region
            $region29: #{tpu_custom_call.1} parent=23 // pred_check
              _
            $region30: #{tpu_custom_call.1} parent=23 // pred_check_branch
              %124 = sbr.rel target = $region32
            $region31: #{tpu_custom_call.1} parent=23 // pred_region
              loop: start=0, step=1, limit=1
              $region33: #{tpu_custom_call.1} parent=31 // loop_pre_header
                _
              $region34: #{tpu_custom_call.1} parent=31 // loop_header
                %s127 = sphi 0, %s131
                %p128 = scmp.ge.s32.totalorder %s127, 1
                %s132 = sphi %s118, %s118
                %s133 = sphi %s114, %s114
              $region35: #{tpu_custom_call.1} parent=31 // loop_header_branch
                %130 = sbr.rel (%p128) target = $region39
              $region36: #{tpu_custom_call.1} parent=31 // loop_body
                %v134 = vld [vmem:[%s132] sm:$0xff]
                %135 = vst [vmem:[%s133] sm:$0xff] %v134
                %v136 = vld [vmem:[%s132 + $0x10] sm:$0xff]
                %137 = vst [vmem:[%s133 + $0x8] sm:$0xff] %v136
                %v138 = vld [vmem:[%s132 + $0x20] sm:$0xff]
                %139 = vst [vmem:[%s133 + $0x10] sm:$0xff] %v138
                %v140 = vld [vmem:[%s132 + $0x30] sm:$0xff]
                %141 = vst [vmem:[%s133 + $0x18] sm:$0xff] %v140
                %v142 = vld [vmem:[%s132 + $0x40] sm:$0xff]
                %143 = vst [vmem:[%s133 + $0x20] sm:$0xff] %v142
                %v144 = vld [vmem:[%s132 + $0x50] sm:$0xff]
                %145 = vst [vmem:[%s133 + $0x28] sm:$0xff] %v144
                %v146 = vld [vmem:[%s132 + $0x60] sm:$0xff]
                %147 = vst [vmem:[%s133 + $0x30] sm:$0xff] %v146
                %v148 = vld [vmem:[%s132 + $0x70] sm:$0xff]
                %149 = vst [vmem:[%s133 + $0x38] sm:$0xff] %v148
                %v150 = vld [vmem:[%s132 + $0x80] sm:$0xff]
                %151 = vst [vmem:[%s133 + $0x40] sm:$0xff] %v150
                %v152 = vld [vmem:[%s132 + $0x90] sm:$0xff]
                %153 = vst [vmem:[%s133 + $0x48] sm:$0xff] %v152
                %v154 = vld [vmem:[%s132 + $0xa0] sm:$0xff]
                %155 = vst [vmem:[%s133 + $0x50] sm:$0xff] %v154
                %v156 = vld [vmem:[%s132 + $0xb0] sm:$0xff]
                %157 = vst [vmem:[%s133 + $0x58] sm:$0xff] %v156
                %v158 = vld [vmem:[%s132 + $0xc0] sm:$0xff]
                %159 = vst [vmem:[%s133 + $0x60] sm:$0xff] %v158
                %v160 = vld [vmem:[%s132 + $0xd0] sm:$0xff]
                %161 = vst [vmem:[%s133 + $0x68] sm:$0xff] %v160
                %v162 = vld [vmem:[%s132 + $0xe0] sm:$0xff]
                %163 = vst [vmem:[%s133 + $0x70] sm:$0xff] %v162
                %v164 = vld [vmem:[%s132 + $0xf0] sm:$0xff]
                %165 = vst [vmem:[%s133 + $0x78] sm:$0xff] %v164
                %v166 = vld [vmem:[%s132 + $0x100] sm:$0xff]
                %167 = vst [vmem:[%s133 + $0x80] sm:$0xff] %v166
                %v168 = vld [vmem:[%s132 + $0x110] sm:$0xff]
                %169 = vst [vmem:[%s133 + $0x88] sm:$0xff] %v168
                %v170 = vld [vmem:[%s132 + $0x120] sm:$0xff]
                %171 = vst [vmem:[%s133 + $0x90] sm:$0xff] %v170
                %v172 = vld [vmem:[%s132 + $0x130] sm:$0xff]
                %173 = vst [vmem:[%s133 + $0x98] sm:$0xff] %v172
                %v174 = vld [vmem:[%s132 + $0x140] sm:$0xff]
                %175 = vst [vmem:[%s133 + $0xa0] sm:$0xff] %v174
                %v176 = vld [vmem:[%s132 + $0x150] sm:$0xff]
                %177 = vst [vmem:[%s133 + $0xa8] sm:$0xff] %v176
                %v178 = vld [vmem:[%s132 + $0x160] sm:$0xff]
                %179 = vst [vmem:[%s133 + $0xb0] sm:$0xff] %v178
                %v180 = vld [vmem:[%s132 + $0x170] sm:$0xff]
                %181 = vst [vmem:[%s133 + $0xb8] sm:$0xff] %v180
                %v182 = vld [vmem:[%s132 + $0x180] sm:$0xff]
                %183 = vst [vmem:[%s133 + $0xc0] sm:$0xff] %v182
                %v184 = vld [vmem:[%s132 + $0x190] sm:$0xff]
                %185 = vst [vmem:[%s133 + $0xc8] sm:$0xff] %v184
                %v186 = vld [vmem:[%s132 + $0x1a0] sm:$0xff]
                %187 = vst [vmem:[%s133 + $0xd0] sm:$0xff] %v186
                %v188 = vld [vmem:[%s132 + $0x1b0] sm:$0xff]
                %189 = vst [vmem:[%s133 + $0xd8] sm:$0xff] %v188
                %v190 = vld [vmem:[%s132 + $0x1c0] sm:$0xff]
                %191 = vst [vmem:[%s133 + $0xe0] sm:$0xff] %v190
                %v192 = vld [vmem:[%s132 + $0x1d0] sm:$0xff]
                %193 = vst [vmem:[%s133 + $0xe8] sm:$0xff] %v192
                %v194 = vld [vmem:[%s132 + $0x1e0] sm:$0xff]
                %195 = vst [vmem:[%s133 + $0xf0] sm:$0xff] %v194
                %v196 = vld [vmem:[%s132 + $0x1f0] sm:$0xff]
                %197 = vst [vmem:[%s133 + $0xf8] sm:$0xff] %v196
              $region37: #{tpu_custom_call.1} parent=31 // loop_footer
                %s131 = sadd.s32 1, %s127
              $region38: #{tpu_custom_call.1} parent=31 // loop_footer_branch
                %126 = sbr.rel target = $region34
              $region39: #{tpu_custom_call.1} parent=31 // loop_exit
                _
            $region32: #{tpu_custom_call.1} parent=23 // pred_fallthru
              _
          $region24: #{tpu_custom_call.1} parent=19 // pred_fallthru
            _
          %274 = vnop
        $region20: #{tpu_custom_call.1} parent=15 // pred_fallthru
          _
        // Predicated region
        $region55: #{tpu_custom_call.1} parent=15 // pred_check
          %p275 = pneg %p57
        $region56: #{tpu_custom_call.1} parent=15 // pred_check_branch
          %277 = sbr.rel (%p275) target = $region58
        $region57: #{tpu_custom_call.1} parent=15 // pred_region
          %p278 = scmp.lt.s32.totalorder %s11, 1
          %s279 = scalar_select %p278, %s11, 1
          %s280 = smul.addr %s279, 2
          %s281 = scalar_lea.vmem %s1, %s280
        $region58: #{tpu_custom_call.1} parent=15 // pred_fallthru
          _
      $region16: #{tpu_custom_call.1} parent=5 // pred_fallthru
        _
      %p282 = scmp.le.s32.totalorder 1, %s11
      %p283 = scmp.lt.s32.totalorder %s11, 3
      %p284 = pnand %p282, %p283
      %p285 = pneg %p284
      // Predicated region
      $region59: #{tpu_custom_call.1} parent=5 // pred_check
        _
      $region60: #{tpu_custom_call.1} parent=5 // pred_check_branch
        %287 = sbr.rel (%p284) target = $region62
      $region61: #{tpu_custom_call.1} parent=5 // pred_region
        %s288 = ssub.s32 %s11, 1
        %s289 = sand.u32 %s24, 1
        %s290 = sand.u32 %s24, 1
        %s291 = smul.addr %s290, 256
        %s292 = scalar_lea.vmem [#allocation2], %s291
        // Predicated region
        $region63: #{tpu_custom_call.1} parent=61 // pred_check
          %p293 = pneg %p37
        $region64: #{tpu_custom_call.1} parent=61 // pred_check_branch
          %295 = sbr.rel (%p293) target = $region66
        $region65: #{tpu_custom_call.1} parent=61 // pred_region
          _
        $region66: #{tpu_custom_call.1} parent=61 // pred_fallthru
          _
        %s296 = sand.u32 %s24, 1
        %s297 = sand.u32 %s24, 1
        %s298 = smul.addr %s297, 256
        %s299 = scalar_lea.vmem [#allocation2], %s298
        %p300 = pneg %p37
        %p301 = pneg %p34
        %p302 = scmp.lt.s32.totalorder %s16, 1
        %s303 = scalar_select %p302, %s16, 1
        %s304 = smul.addr %s303, 2
        %s305 = scalar_lea.vmem %s1, %s304
        %p306 = pneg %p63
        %p307 = pneg %p60
        %p308 = pneg %p89
        %p309 = pneg %p86
        %s310 = sand.u32 %s76, 1
        %s311 = scalar_lea.sflag [#allocation4], %s310
        %s312 = sand.u32 %s76, 1
        %s313 = smul.addr %s312, 256
        %s314 = scalar_lea.vmem [#allocation3], %s313
        %s315 = smul.u32 32, %s16
        %p316 = scmp.lt.s32.totalorder %s16, 1
        %s317 = scalar_select %p316, %s16, 1
        %s318 = smul.addr %s317, 2
        %s319 = scalar_lea.vmem %s1, %s318
        %s320 = smul.u32 32, %s16
        %v321 = vld [vmem:[%s292] sm:$0xff]
        %v322 = vld [vmem:[%s292 + $0x8] sm:$0xff]
        %v323 = vld [vmem:[%s292 + $0x10] sm:$0xff]
        %v324 = vld [vmem:[%s292 + $0x18] sm:$0xff]
        %v325 = vld [vmem:[%s292 + $0x20] sm:$0xff]
        %v326 = vld [vmem:[%s292 + $0x28] sm:$0xff]
        %v327 = vld [vmem:[%s292 + $0x30] sm:$0xff]
        %v328 = vld [vmem:[%s292 + $0x38] sm:$0xff]
        %v329 = vld [vmem:[%s292 + $0x40] sm:$0xff]
        %v330 = vld [vmem:[%s292 + $0x48] sm:$0xff]
        %v331 = vld [vmem:[%s292 + $0x50] sm:$0xff]
        %v332 = vld [vmem:[%s292 + $0x58] sm:$0xff]
        %v333 = vld [vmem:[%s292 + $0x60] sm:$0xff]
        %v334 = vld [vmem:[%s292 + $0x68] sm:$0xff]
        %v335 = vld [vmem:[%s292 + $0x70] sm:$0xff]
        %v336 = vld [vmem:[%s292 + $0x78] sm:$0xff]
        %v337 = vld [vmem:[%s292 + $0x80] sm:$0xff]
        %v338 = vld [vmem:[%s292 + $0x88] sm:$0xff]
        %v339 = vld [vmem:[%s292 + $0x90] sm:$0xff]
        %v340 = vld [vmem:[%s292 + $0x98] sm:$0xff]
        %v341 = vld [vmem:[%s292 + $0xa0] sm:$0xff]
        %v342 = vld [vmem:[%s292 + $0xa8] sm:$0xff]
        %v343 = vld [vmem:[%s292 + $0xb0] sm:$0xff]
        %v344 = vld [vmem:[%s292 + $0xb8] sm:$0xff]
        %v345 = vld [vmem:[%s292 + $0xc0] sm:$0xff]
        %v346 = vld [vmem:[%s292 + $0xc8] sm:$0xff]
        %v347 = vld [vmem:[%s292 + $0xd0] sm:$0xff]
        %v348 = vld [vmem:[%s292 + $0xd8] sm:$0xff]
        %v349 = vld [vmem:[%s292 + $0xe0] sm:$0xff]
        %v350 = vld [vmem:[%s292 + $0xe8] sm:$0xff]
        %v351 = vld [vmem:[%s292 + $0xf0] sm:$0xff]
        %v352 = vld [vmem:[%s292 + $0xf8] sm:$0xff]
        %v353 = vld [vmem:[%s319] sm:$0x3]
        %v354 = vlaneseq
        %v355 = vshrl.u32 %v354, 7
        %v356 = vsub.s32 0, %v355
        %v357 = vrot.slane %v353, %v356
        %v358 = vlaneseq
        %v359 = vshrl.u32 %v358, 7
        %v360 = vsub.s32 1, %v359
        %v361 = vrot.slane %v353, %v360
        %362 = vxpose.xlu0.b32.start [1/16] %v357, 128
        %363 = vxpose.xlu0.b32.cont [2/16] 0, 128
        %364 = vxpose.xlu0.b32.cont [3/16] 0, 128
        %365 = vxpose.xlu0.b32.cont [4/16] 0, 128
        %366 = vxpose.xlu0.b32.cont [5/16] 0, 128
        %367 = vxpose.xlu0.b32.cont [6/16] 0, 128
        %368 = vxpose.xlu0.b32.cont [7/16] 0, 128
        %369 = vxpose.xlu0.b32.cont [8/16] 0, 128
        %370 = vxpose.xlu0.b32.cont [9/16] 0, 128
        %371 = vxpose.xlu0.b32.cont [10/16] 0, 128
        %372 = vxpose.xlu0.b32.cont [11/16] 0, 128
        %373 = vxpose.xlu0.b32.cont [12/16] 0, 128
        %374 = vxpose.xlu0.b32.cont [13/16] 0, 128
        %375 = vxpose.xlu0.b32.cont [14/16] 0, 128
        %376 = vxpose.xlu0.b32.cont [15/16] 0, 128
        %377 = vxpose.xlu0.b32.end [16/16] 0, 128
        %v378 = vpop.trf.xlu0
        %v379 = vpop.trf.xlu0
        %v380 = vpop.trf.xlu0
        %v381 = vpop.trf.xlu0
        %v382 = vpop.trf.xlu0
        %v383 = vpop.trf.xlu0
        %v384 = vpop.trf.xlu0
        %v385 = vpop.trf.xlu0
        %v386 = vpop.trf.xlu0
        %v387 = vpop.trf.xlu0
        %v388 = vpop.trf.xlu0
        %v389 = vpop.trf.xlu0
        %v390 = vpop.trf.xlu0
        %v391 = vpop.trf.xlu0
        %v392 = vpop.trf.xlu0
        %v393 = vpop.trf.xlu0
        %394 = vxpose.xlu0.b32.start [1/16] %v361, 128
        %395 = vxpose.xlu0.b32.cont [2/16] 0, 128
        %396 = vxpose.xlu0.b32.cont [3/16] 0, 128
        %397 = vxpose.xlu0.b32.cont [4/16] 0, 128
        %398 = vxpose.xlu0.b32.cont [5/16] 0, 128
        %399 = vxpose.xlu0.b32.cont [6/16] 0, 128
        %400 = vxpose.xlu0.b32.cont [7/16] 0, 128
        %401 = vxpose.xlu0.b32.cont [8/16] 0, 128
        %402 = vxpose.xlu0.b32.cont [9/16] 0, 128
        %403 = vxpose.xlu0.b32.cont [10/16] 0, 128
        %404 = vxpose.xlu0.b32.cont [11/16] 0, 128
        %405 = vxpose.xlu0.b32.cont [12/16] 0, 128
        %406 = vxpose.xlu0.b32.cont [13/16] 0, 128
        %407 = vxpose.xlu0.b32.cont [14/16] 0, 128
        %408 = vxpose.xlu0.b32.cont [15/16] 0, 128
        %409 = vxpose.xlu0.b32.end [16/16] 0, 128
        %v410 = vpop.trf.xlu0
        %v411 = vpop.trf.xlu0
        %v412 = vpop.trf.xlu0
        %v413 = vpop.trf.xlu0
        %v414 = vpop.trf.xlu0
        %v415 = vpop.trf.xlu0
        %v416 = vpop.trf.xlu0
        %v417 = vpop.trf.xlu0
        %v418 = vpop.trf.xlu0
        %v419 = vpop.trf.xlu0
        %v420 = vpop.trf.xlu0
        %v421 = vpop.trf.xlu0
        %v422 = vpop.trf.xlu0
        %v423 = vpop.trf.xlu0
        %v424 = vpop.trf.xlu0
        %v425 = vpop.trf.xlu0
        %vm426 = vcmp.gt.s32.totalorder %v378, 0
        %v427 = vsel %vm426, %v378, 0
        %vm428 = vcmp.gt.s32.totalorder %v379, 0
        %v429 = vsel %vm428, %v379, 0
        %vm430 = vcmp.gt.s32.totalorder %v380, 0
        %v431 = vsel %vm430, %v380, 0
        %vm432 = vcmp.gt.s32.totalorder %v381, 0
        %v433 = vsel %vm432, %v381, 0
        %vm434 = vcmp.gt.s32.totalorder %v382, 0
        %v435 = vsel %vm434, %v382, 0
        %vm436 = vcmp.gt.s32.totalorder %v383, 0
        %v437 = vsel %vm436, %v383, 0
        %vm438 = vcmp.gt.s32.totalorder %v384, 0
        %v439 = vsel %vm438, %v384, 0
        %vm440 = vcmp.gt.s32.totalorder %v385, 0
        %v441 = vsel %vm440, %v385, 0
        %vm442 = vcmp.gt.s32.totalorder %v386, 0
        %v443 = vsel %vm442, %v386, 0
        %vm444 = vcmp.gt.s32.totalorder %v387, 0
        %v445 = vsel %vm444, %v387, 0
        %vm446 = vcmp.gt.s32.totalorder %v388, 0
        %v447 = vsel %vm446, %v388, 0
        %vm448 = vcmp.gt.s32.totalorder %v389, 0
        %v449 = vsel %vm448, %v389, 0
        %vm450 = vcmp.gt.s32.totalorder %v390, 0
        %v451 = vsel %vm450, %v390, 0
        %vm452 = vcmp.gt.s32.totalorder %v391, 0
        %v453 = vsel %vm452, %v391, 0
        %vm454 = vcmp.gt.s32.totalorder %v392, 0
        %v455 = vsel %vm454, %v392, 0
        %vm456 = vcmp.gt.s32.totalorder %v393, 0
        %v457 = vsel %vm456, %v393, 0
        %vm458 = vcmp.gt.s32.totalorder %v410, 0
        %v459 = vsel %vm458, %v410, 0
        %vm460 = vcmp.gt.s32.totalorder %v411, 0
        %v461 = vsel %vm460, %v411, 0
        %vm462 = vcmp.gt.s32.totalorder %v412, 0
        %v463 = vsel %vm462, %v412, 0
        %vm464 = vcmp.gt.s32.totalorder %v413, 0
        %v465 = vsel %vm464, %v413, 0
        %vm466 = vcmp.gt.s32.totalorder %v414, 0
        %v467 = vsel %vm466, %v414, 0
        %vm468 = vcmp.gt.s32.totalorder %v415, 0
        %v469 = vsel %vm468, %v415, 0
        %vm470 = vcmp.gt.s32.totalorder %v416, 0
        %v471 = vsel %vm470, %v416, 0
        %vm472 = vcmp.gt.s32.totalorder %v417, 0
        %v473 = vsel %vm472, %v417, 0
        %vm474 = vcmp.gt.s32.totalorder %v418, 0
        %v475 = vsel %vm474, %v418, 0
        %vm476 = vcmp.gt.s32.totalorder %v419, 0
        %v477 = vsel %vm476, %v419, 0
        %vm478 = vcmp.gt.s32.totalorder %v420, 0
        %v479 = vsel %vm478, %v420, 0
        %vm480 = vcmp.gt.s32.totalorder %v421, 0
        %v481 = vsel %vm480, %v421, 0
        %vm482 = vcmp.gt.s32.totalorder %v422, 0
        %v483 = vsel %vm482, %v422, 0
        %vm484 = vcmp.gt.s32.totalorder %v423, 0
        %v485 = vsel %vm484, %v423, 0
        %vm486 = vcmp.gt.s32.totalorder %v424, 0
        %v487 = vsel %vm486, %v424, 0
        %vm488 = vcmp.gt.s32.totalorder %v425, 0
        %v489 = vsel %vm488, %v425, 0
        %v490 = vlaneseq
        %v491 = vand.u32 %v490, 127
        %vm492 = vcmp.lt.s32.totalorder %v427, 126
        %v493 = vsel %vm492, %v427, 126
        %vm494 = vcmp.lt.s32.totalorder %v429, 126
        %v495 = vsel %vm494, %v429, 126
        %vm496 = vcmp.lt.s32.totalorder %v431, 126
        %v497 = vsel %vm496, %v431, 126
        %vm498 = vcmp.lt.s32.totalorder %v433, 126
        %v499 = vsel %vm498, %v433, 126
        %vm500 = vcmp.lt.s32.totalorder %v435, 126
        %v501 = vsel %vm500, %v435, 126
        %vm502 = vcmp.lt.s32.totalorder %v437, 126
        %v503 = vsel %vm502, %v437, 126
        %vm504 = vcmp.lt.s32.totalorder %v439, 126
        %v505 = vsel %vm504, %v439, 126
        %vm506 = vcmp.lt.s32.totalorder %v441, 126
        %v507 = vsel %vm506, %v441, 126
        %vm508 = vcmp.lt.s32.totalorder %v443, 126
        %v509 = vsel %vm508, %v443, 126
        %vm510 = vcmp.lt.s32.totalorder %v445, 126
        %v511 = vsel %vm510, %v445, 126
        %vm512 = vcmp.lt.s32.totalorder %v447, 126
        %v513 = vsel %vm512, %v447, 126
        %vm514 = vcmp.lt.s32.totalorder %v449, 126
        %v515 = vsel %vm514, %v449, 126
        %vm516 = vcmp.lt.s32.totalorder %v451, 126
        %v517 = vsel %vm516, %v451, 126
        %vm518 = vcmp.lt.s32.totalorder %v453, 126
        %v519 = vsel %vm518, %v453, 126
        %vm520 = vcmp.lt.s32.totalorder %v455, 126
        %v521 = vsel %vm520, %v455, 126
        %vm522 = vcmp.lt.s32.totalorder %v457, 126
        %v523 = vsel %vm522, %v457, 126
        %vm524 = vcmp.lt.s32.totalorder %v459, 126
        %v525 = vsel %vm524, %v459, 126
        %vm526 = vcmp.lt.s32.totalorder %v461, 126
        %v527 = vsel %vm526, %v461, 126
        %vm528 = vcmp.lt.s32.totalorder %v463, 126
        %v529 = vsel %vm528, %v463, 126
        %vm530 = vcmp.lt.s32.totalorder %v465, 126
        %v531 = vsel %vm530, %v465, 126
        %vm532 = vcmp.lt.s32.totalorder %v467, 126
        %v533 = vsel %vm532, %v467, 126
        %vm534 = vcmp.lt.s32.totalorder %v469, 126
        %v535 = vsel %vm534, %v469, 126
        %vm536 = vcmp.lt.s32.totalorder %v471, 126
        %v537 = vsel %vm536, %v471, 126
        %vm538 = vcmp.lt.s32.totalorder %v473, 126
        %v539 = vsel %vm538, %v473, 126
        %vm540 = vcmp.lt.s32.totalorder %v475, 126
        %v541 = vsel %vm540, %v475, 126
        %vm542 = vcmp.lt.s32.totalorder %v477, 126
        %v543 = vsel %vm542, %v477, 126
        %vm544 = vcmp.lt.s32.totalorder %v479, 126
        %v545 = vsel %vm544, %v479, 126
        %vm546 = vcmp.lt.s32.totalorder %v481, 126
        %v547 = vsel %vm546, %v481, 126
        %vm548 = vcmp.lt.s32.totalorder %v483, 126
        %v549 = vsel %vm548, %v483, 126
        %vm550 = vcmp.lt.s32.totalorder %v485, 126
        %v551 = vsel %vm550, %v485, 126
        %vm552 = vcmp.lt.s32.totalorder %v487, 126
        %v553 = vsel %vm552, %v487, 126
        %vm554 = vcmp.lt.s32.totalorder %v489, 126
        %v555 = vsel %vm554, %v489, 126
        %556 = vrot.lane.b32.xlu0 %v321, 1
        %v557 = vpop.permute.xlu0 %556
        %558 = vrot.lane.b32.xlu0 %v322, 1
        %v559 = vpop.permute.xlu0 %558
        %560 = vrot.lane.b32.xlu0 %v323, 1
        %v561 = vpop.permute.xlu0 %560
        %562 = vrot.lane.b32.xlu0 %v324, 1
        %v563 = vpop.permute.xlu0 %562
        %564 = vrot.lane.b32.xlu0 %v325, 1
        %v565 = vpop.permute.xlu0 %564
        %566 = vrot.lane.b32.xlu0 %v326, 1
        %v567 = vpop.permute.xlu0 %566
        %568 = vrot.lane.b32.xlu0 %v327, 1
        %v569 = vpop.permute.xlu0 %568
        %570 = vrot.lane.b32.xlu0 %v328, 1
        %v571 = vpop.permute.xlu0 %570
        %572 = vrot.lane.b32.xlu0 %v329, 1
        %v573 = vpop.permute.xlu0 %572
        %574 = vrot.lane.b32.xlu0 %v330, 1
        %v575 = vpop.permute.xlu0 %574
        %576 = vrot.lane.b32.xlu0 %v331, 1
        %v577 = vpop.permute.xlu0 %576
        %578 = vrot.lane.b32.xlu0 %v332, 1
        %v579 = vpop.permute.xlu0 %578
        %580 = vrot.lane.b32.xlu0 %v333, 1
        %v581 = vpop.permute.xlu0 %580
        %582 = vrot.lane.b32.xlu0 %v334, 1
        %v583 = vpop.permute.xlu0 %582
        %584 = vrot.lane.b32.xlu0 %v335, 1
        %v585 = vpop.permute.xlu0 %584
        %586 = vrot.lane.b32.xlu0 %v336, 1
        %v587 = vpop.permute.xlu0 %586
        %588 = vrot.lane.b32.xlu0 %v337, 1
        %v589 = vpop.permute.xlu0 %588
        %590 = vrot.lane.b32.xlu0 %v338, 1
        %v591 = vpop.permute.xlu0 %590
        %592 = vrot.lane.b32.xlu0 %v339, 1
        %v593 = vpop.permute.xlu0 %592
        %594 = vrot.lane.b32.xlu0 %v340, 1
        %v595 = vpop.permute.xlu0 %594
        %596 = vrot.lane.b32.xlu0 %v341, 1
        %v597 = vpop.permute.xlu0 %596
        %598 = vrot.lane.b32.xlu0 %v342, 1
        %v599 = vpop.permute.xlu0 %598
        %600 = vrot.lane.b32.xlu0 %v343, 1
        %v601 = vpop.permute.xlu0 %600
        %602 = vrot.lane.b32.xlu0 %v344, 1
        %v603 = vpop.permute.xlu0 %602
        %604 = vrot.lane.b32.xlu0 %v345, 1
        %v605 = vpop.permute.xlu0 %604
        %606 = vrot.lane.b32.xlu0 %v346, 1
        %v607 = vpop.permute.xlu0 %606
        %608 = vrot.lane.b32.xlu0 %v347, 1
        %v609 = vpop.permute.xlu0 %608
        %610 = vrot.lane.b32.xlu0 %v348, 1
        %v611 = vpop.permute.xlu0 %610
        %612 = vrot.lane.b32.xlu0 %v349, 1
        %v613 = vpop.permute.xlu0 %612
        %614 = vrot.lane.b32.xlu0 %v350, 1
        %v615 = vpop.permute.xlu0 %614
        %616 = vrot.lane.b32.xlu0 %v351, 1
        %v617 = vpop.permute.xlu0 %616
        %618 = vrot.lane.b32.xlu0 %v352, 1
        %v619 = vpop.permute.xlu0 %618
        %vm620 = vcmp.eq.s32.totalorder %v491, 0
        %621 = vset.pattern.permute.xlu0 0
        %622 = vperm.xlu0 %621, %v493
        %v623 = vpop.permute.xlu0 %622
        %624 = vset.pattern.permute.xlu0 0
        %625 = vperm.xlu0 %624, %v495
        %v626 = vpop.permute.xlu0 %625
        %627 = vset.pattern.permute.xlu0 0
        %628 = vperm.xlu0 %627, %v497
        %v629 = vpop.permute.xlu0 %628
        %630 = vset.pattern.permute.xlu0 0
        %631 = vperm.xlu0 %630, %v499
        %v632 = vpop.permute.xlu0 %631
        %633 = vset.pattern.permute.xlu0 0
        %634 = vperm.xlu0 %633, %v501
        %v635 = vpop.permute.xlu0 %634
        %636 = vset.pattern.permute.xlu0 0
        %637 = vperm.xlu0 %636, %v503
        %v638 = vpop.permute.xlu0 %637
        %639 = vset.pattern.permute.xlu0 0
        %640 = vperm.xlu0 %639, %v505
        %v641 = vpop.permute.xlu0 %640
        %642 = vset.pattern.permute.xlu0 0
        %643 = vperm.xlu0 %642, %v507
        %v644 = vpop.permute.xlu0 %643
        %645 = vset.pattern.permute.xlu0 0
        %646 = vperm.xlu0 %645, %v509
        %v647 = vpop.permute.xlu0 %646
        %648 = vset.pattern.permute.xlu0 0
        %649 = vperm.xlu0 %648, %v511
        %v650 = vpop.permute.xlu0 %649
        %651 = vset.pattern.permute.xlu0 0
        %652 = vperm.xlu0 %651, %v513
        %v653 = vpop.permute.xlu0 %652
        %654 = vset.pattern.permute.xlu0 0
        %655 = vperm.xlu0 %654, %v515
        %v656 = vpop.permute.xlu0 %655
        %657 = vset.pattern.permute.xlu0 0
        %658 = vperm.xlu0 %657, %v517
        %v659 = vpop.permute.xlu0 %658
        %660 = vset.pattern.permute.xlu0 0
        %661 = vperm.xlu0 %660, %v519
        %v662 = vpop.permute.xlu0 %661
        %663 = vset.pattern.permute.xlu0 0
        %664 = vperm.xlu0 %663, %v521
        %v665 = vpop.permute.xlu0 %664
        %666 = vset.pattern.permute.xlu0 0
        %667 = vperm.xlu0 %666, %v523
        %v668 = vpop.permute.xlu0 %667
        %669 = vset.pattern.permute.xlu0 0
        %670 = vperm.xlu0 %669, %v525
        %v671 = vpop.permute.xlu0 %670
        %672 = vset.pattern.permute.xlu0 0
        %673 = vperm.xlu0 %672, %v527
        %v674 = vpop.permute.xlu0 %673
        %675 = vset.pattern.permute.xlu0 0
        %676 = vperm.xlu0 %675, %v529
        %v677 = vpop.permute.xlu0 %676
        %678 = vset.pattern.permute.xlu0 0
        %679 = vperm.xlu0 %678, %v531
        %v680 = vpop.permute.xlu0 %679
        %681 = vset.pattern.permute.xlu0 0
        %682 = vperm.xlu0 %681, %v533
        %v683 = vpop.permute.xlu0 %682
        %684 = vset.pattern.permute.xlu0 0
        %685 = vperm.xlu0 %684, %v535
        %v686 = vpop.permute.xlu0 %685
        %687 = vset.pattern.permute.xlu0 0
        %688 = vperm.xlu0 %687, %v537
        %v689 = vpop.permute.xlu0 %688
        %690 = vset.pattern.permute.xlu0 0
        %691 = vperm.xlu0 %690, %v539
        %v692 = vpop.permute.xlu0 %691
        %693 = vset.pattern.permute.xlu0 0
        %694 = vperm.xlu0 %693, %v541
        %v695 = vpop.permute.xlu0 %694
        %696 = vset.pattern.permute.xlu0 0
        %697 = vperm.xlu0 %696, %v543
        %v698 = vpop.permute.xlu0 %697
        %699 = vset.pattern.permute.xlu0 0
        %700 = vperm.xlu0 %699, %v545
        %v701 = vpop.permute.xlu0 %700
        %702 = vset.pattern.permute.xlu0 0
        %703 = vperm.xlu0 %702, %v547
        %v704 = vpop.permute.xlu0 %703
        %705 = vset.pattern.permute.xlu0 0
        %706 = vperm.xlu0 %705, %v549
        %v707 = vpop.permute.xlu0 %706
        %708 = vset.pattern.permute.xlu0 0
        %709 = vperm.xlu0 %708, %v551
        %v710 = vpop.permute.xlu0 %709
        %711 = vset.pattern.permute.xlu0 0
        %712 = vperm.xlu0 %711, %v553
        %v713 = vpop.permute.xlu0 %712
        %714 = vset.pattern.permute.xlu0 0
        %715 = vperm.xlu0 %714, %v555
        %v716 = vpop.permute.xlu0 %715
        %vm717 = vcmp.le.s32.totalorder %v491, %v623
        %vm718 = vcmp.le.s32.totalorder %v491, %v626
        %vm719 = vcmp.le.s32.totalorder %v491, %v629
        %vm720 = vcmp.le.s32.totalorder %v491, %v632
        %vm721 = vcmp.le.s32.totalorder %v491, %v635
        %vm722 = vcmp.le.s32.totalorder %v491, %v638
        %vm723 = vcmp.le.s32.totalorder %v491, %v641
        %vm724 = vcmp.le.s32.totalorder %v491, %v644
        %vm725 = vcmp.le.s32.totalorder %v491, %v647
        %vm726 = vcmp.le.s32.totalorder %v491, %v650
        %vm727 = vcmp.le.s32.totalorder %v491, %v653
        %vm728 = vcmp.le.s32.totalorder %v491, %v656
        %vm729 = vcmp.le.s32.totalorder %v491, %v659
        %vm730 = vcmp.le.s32.totalorder %v491, %v662
        %vm731 = vcmp.le.s32.totalorder %v491, %v665
        %vm732 = vcmp.le.s32.totalorder %v491, %v668
        %vm733 = vcmp.le.s32.totalorder %v491, %v671
        %vm734 = vcmp.le.s32.totalorder %v491, %v674
        %vm735 = vcmp.le.s32.totalorder %v491, %v677
        %vm736 = vcmp.le.s32.totalorder %v491, %v680
        %vm737 = vcmp.le.s32.totalorder %v491, %v683
        %vm738 = vcmp.le.s32.totalorder %v491, %v686
        %vm739 = vcmp.le.s32.totalorder %v491, %v689
        %vm740 = vcmp.le.s32.totalorder %v491, %v692
        %vm741 = vcmp.le.s32.totalorder %v491, %v695
        %vm742 = vcmp.le.s32.totalorder %v491, %v698
        %vm743 = vcmp.le.s32.totalorder %v491, %v701
        %vm744 = vcmp.le.s32.totalorder %v491, %v704
        %vm745 = vcmp.le.s32.totalorder %v491, %v707
        %vm746 = vcmp.le.s32.totalorder %v491, %v710
        %vm747 = vcmp.le.s32.totalorder %v491, %v713
        %vm748 = vcmp.le.s32.totalorder %v491, %v716
        %v749 = vadd.s32 %v493, 1
        %v750 = vadd.s32 %v495, 1
        %v751 = vadd.s32 %v497, 1
        %v752 = vadd.s32 %v499, 1
        %v753 = vadd.s32 %v501, 1
        %v754 = vadd.s32 %v503, 1
        %v755 = vadd.s32 %v505, 1
        %v756 = vadd.s32 %v507, 1
        %v757 = vadd.s32 %v509, 1
        %v758 = vadd.s32 %v511, 1
        %v759 = vadd.s32 %v513, 1
        %v760 = vadd.s32 %v515, 1
        %v761 = vadd.s32 %v517, 1
        %v762 = vadd.s32 %v519, 1
        %v763 = vadd.s32 %v521, 1
        %v764 = vadd.s32 %v523, 1
        %v765 = vadd.s32 %v525, 1
        %v766 = vadd.s32 %v527, 1
        %v767 = vadd.s32 %v529, 1
        %v768 = vadd.s32 %v531, 1
        %v769 = vadd.s32 %v533, 1
        %v770 = vadd.s32 %v535, 1
        %v771 = vadd.s32 %v537, 1
        %v772 = vadd.s32 %v539, 1
        %v773 = vadd.s32 %v541, 1
        %v774 = vadd.s32 %v543, 1
        %v775 = vadd.s32 %v545, 1
        %v776 = vadd.s32 %v547, 1
        %v777 = vadd.s32 %v549, 1
        %v778 = vadd.s32 %v551, 1
        %v779 = vadd.s32 %v553, 1
        %v780 = vadd.s32 %v555, 1
        %781 = vset.pattern.permute.xlu0 0
        %782 = vperm.xlu0 %781, %v749
        %v783 = vpop.permute.xlu0 %782
        %784 = vset.pattern.permute.xlu0 0
        %785 = vperm.xlu0 %784, %v750
        %v786 = vpop.permute.xlu0 %785
        %787 = vset.pattern.permute.xlu0 0
        %788 = vperm.xlu0 %787, %v751
        %v789 = vpop.permute.xlu0 %788
        %790 = vset.pattern.permute.xlu0 0
        %791 = vperm.xlu0 %790, %v752
        %v792 = vpop.permute.xlu0 %791
        %793 = vset.pattern.permute.xlu0 0
        %794 = vperm.xlu0 %793, %v753
        %v795 = vpop.permute.xlu0 %794
        %796 = vset.pattern.permute.xlu0 0
        %797 = vperm.xlu0 %796, %v754
        %v798 = vpop.permute.xlu0 %797
        %799 = vset.pattern.permute.xlu0 0
        %800 = vperm.xlu0 %799, %v755
        %v801 = vpop.permute.xlu0 %800
        %802 = vset.pattern.permute.xlu0 0
        %803 = vperm.xlu0 %802, %v756
        %v804 = vpop.permute.xlu0 %803
        %805 = vset.pattern.permute.xlu0 0
        %806 = vperm.xlu0 %805, %v757
        %v807 = vpop.permute.xlu0 %806
        %808 = vset.pattern.permute.xlu0 0
        %809 = vperm.xlu0 %808, %v758
        %v810 = vpop.permute.xlu0 %809
        %811 = vset.pattern.permute.xlu0 0
        %812 = vperm.xlu0 %811, %v759
        %v813 = vpop.permute.xlu0 %812
        %814 = vset.pattern.permute.xlu0 0
        %815 = vperm.xlu0 %814, %v760
        %v816 = vpop.permute.xlu0 %815
        %817 = vset.pattern.permute.xlu0 0
        %818 = vperm.xlu0 %817, %v761
        %v819 = vpop.permute.xlu0 %818
        %820 = vset.pattern.permute.xlu0 0
        %821 = vperm.xlu0 %820, %v762
        %v822 = vpop.permute.xlu0 %821
        %823 = vset.pattern.permute.xlu0 0
        %824 = vperm.xlu0 %823, %v763
        %v825 = vpop.permute.xlu0 %824
        %826 = vset.pattern.permute.xlu0 0
        %827 = vperm.xlu0 %826, %v764
        %v828 = vpop.permute.xlu0 %827
        %829 = vset.pattern.permute.xlu0 0
        %830 = vperm.xlu0 %829, %v765
        %v831 = vpop.permute.xlu0 %830
        %832 = vset.pattern.permute.xlu0 0
        %833 = vperm.xlu0 %832, %v766
        %v834 = vpop.permute.xlu0 %833
        %835 = vset.pattern.permute.xlu0 0
        %836 = vperm.xlu0 %835, %v767
        %v837 = vpop.permute.xlu0 %836
        %838 = vset.pattern.permute.xlu0 0
        %839 = vperm.xlu0 %838, %v768
        %v840 = vpop.permute.xlu0 %839
        %841 = vset.pattern.permute.xlu0 0
        %842 = vperm.xlu0 %841, %v769
        %v843 = vpop.permute.xlu0 %842
        %844 = vset.pattern.permute.xlu0 0
        %845 = vperm.xlu0 %844, %v770
        %v846 = vpop.permute.xlu0 %845
        %847 = vset.pattern.permute.xlu0 0
        %848 = vperm.xlu0 %847, %v771
        %v849 = vpop.permute.xlu0 %848
        %850 = vset.pattern.permute.xlu0 0
        %851 = vperm.xlu0 %850, %v772
        %v852 = vpop.permute.xlu0 %851
        %853 = vset.pattern.permute.xlu0 0
        %854 = vperm.xlu0 %853, %v773
        %v855 = vpop.permute.xlu0 %854
        %856 = vset.pattern.permute.xlu0 0
        %857 = vperm.xlu0 %856, %v774
        %v858 = vpop.permute.xlu0 %857
        %859 = vset.pattern.permute.xlu0 0
        %860 = vperm.xlu0 %859, %v775
        %v861 = vpop.permute.xlu0 %860
        %862 = vset.pattern.permute.xlu0 0
        %863 = vperm.xlu0 %862, %v776
        %v864 = vpop.permute.xlu0 %863
        %865 = vset.pattern.permute.xlu0 0
        %866 = vperm.xlu0 %865, %v777
        %v867 = vpop.permute.xlu0 %866
        %868 = vset.pattern.permute.xlu0 0
        %869 = vperm.xlu0 %868, %v778
        %v870 = vpop.permute.xlu0 %869
        %871 = vset.pattern.permute.xlu0 0
        %872 = vperm.xlu0 %871, %v779
        %v873 = vpop.permute.xlu0 %872
        %874 = vset.pattern.permute.xlu0 0
        %875 = vperm.xlu0 %874, %v780
        %v876 = vpop.permute.xlu0 %875
        %vm877 = vcmp.eq.s32.totalorder %v491, %v783
        %vm878 = vcmp.eq.s32.totalorder %v491, %v786
        %vm879 = vcmp.eq.s32.totalorder %v491, %v789
        %vm880 = vcmp.eq.s32.totalorder %v491, %v792
        %vm881 = vcmp.eq.s32.totalorder %v491, %v795
        %vm882 = vcmp.eq.s32.totalorder %v491, %v798
        %vm883 = vcmp.eq.s32.totalorder %v491, %v801
        %vm884 = vcmp.eq.s32.totalorder %v491, %v804
        %vm885 = vcmp.eq.s32.totalorder %v491, %v807
        %vm886 = vcmp.eq.s32.totalorder %v491, %v810
        %vm887 = vcmp.eq.s32.totalorder %v491, %v813
        %vm888 = vcmp.eq.s32.totalorder %v491, %v816
        %vm889 = vcmp.eq.s32.totalorder %v491, %v819
        %vm890 = vcmp.eq.s32.totalorder %v491, %v822
        %vm891 = vcmp.eq.s32.totalorder %v491, %v825
        %vm892 = vcmp.eq.s32.totalorder %v491, %v828
        %vm893 = vcmp.eq.s32.totalorder %v491, %v831
        %vm894 = vcmp.eq.s32.totalorder %v491, %v834
        %vm895 = vcmp.eq.s32.totalorder %v491, %v837
        %vm896 = vcmp.eq.s32.totalorder %v491, %v840
        %vm897 = vcmp.eq.s32.totalorder %v491, %v843
        %vm898 = vcmp.eq.s32.totalorder %v491, %v846
        %vm899 = vcmp.eq.s32.totalorder %v491, %v849
        %vm900 = vcmp.eq.s32.totalorder %v491, %v852
        %vm901 = vcmp.eq.s32.totalorder %v491, %v855
        %vm902 = vcmp.eq.s32.totalorder %v491, %v858
        %vm903 = vcmp.eq.s32.totalorder %v491, %v861
        %vm904 = vcmp.eq.s32.totalorder %v491, %v864
        %vm905 = vcmp.eq.s32.totalorder %v491, %v867
        %vm906 = vcmp.eq.s32.totalorder %v491, %v870
        %vm907 = vcmp.eq.s32.totalorder %v491, %v873
        %vm908 = vcmp.eq.s32.totalorder %v491, %v876
        %v909 = vsel %vm877, 2, 1
        %v910 = vsel %vm878, 2, 1
        %v911 = vsel %vm879, 2, 1
        %v912 = vsel %vm880, 2, 1
        %v913 = vsel %vm881, 2, 1
        %v914 = vsel %vm882, 2, 1
        %v915 = vsel %vm883, 2, 1
        %v916 = vsel %vm884, 2, 1
        %v917 = vsel %vm885, 2, 1
        %v918 = vsel %vm886, 2, 1
        %v919 = vsel %vm887, 2, 1
        %v920 = vsel %vm888, 2, 1
        %v921 = vsel %vm889, 2, 1
        %v922 = vsel %vm890, 2, 1
        %v923 = vsel %vm891, 2, 1
        %v924 = vsel %vm892, 2, 1
        %v925 = vsel %vm893, 2, 1
        %v926 = vsel %vm894, 2, 1
        %v927 = vsel %vm895, 2, 1
        %v928 = vsel %vm896, 2, 1
        %v929 = vsel %vm897, 2, 1
        %v930 = vsel %vm898, 2, 1
        %v931 = vsel %vm899, 2, 1
        %v932 = vsel %vm900, 2, 1
        %v933 = vsel %vm901, 2, 1
        %v934 = vsel %vm902, 2, 1
        %v935 = vsel %vm903, 2, 1
        %v936 = vsel %vm904, 2, 1
        %v937 = vsel %vm905, 2, 1
        %v938 = vsel %vm906, 2, 1
        %v939 = vsel %vm907, 2, 1
        %v940 = vsel %vm908, 2, 1
        %v941 = vsel %vm717, %v557, %v909
        %v942 = vsel %vm718, %v559, %v910
        %v943 = vsel %vm719, %v561, %v911
        %v944 = vsel %vm720, %v563, %v912
        %v945 = vsel %vm721, %v565, %v913
        %v946 = vsel %vm722, %v567, %v914
        %v947 = vsel %vm723, %v569, %v915
        %v948 = vsel %vm724, %v571, %v916
        %v949 = vsel %vm725, %v573, %v917
        %v950 = vsel %vm726, %v575, %v918
        %v951 = vsel %vm727, %v577, %v919
        %v952 = vsel %vm728, %v579, %v920
        %v953 = vsel %vm729, %v581, %v921
        %v954 = vsel %vm730, %v583, %v922
        %v955 = vsel %vm731, %v585, %v923
        %v956 = vsel %vm732, %v587, %v924
        %v957 = vsel %vm733, %v589, %v925
        %v958 = vsel %vm734, %v591, %v926
        %v959 = vsel %vm735, %v593, %v927
        %v960 = vsel %vm736, %v595, %v928
        %v961 = vsel %vm737, %v597, %v929
        %v962 = vsel %vm738, %v599, %v930
        %v963 = vsel %vm739, %v601, %v931
        %v964 = vsel %vm740, %v603, %v932
        %v965 = vsel %vm741, %v605, %v933
        %v966 = vsel %vm742, %v607, %v934
        %v967 = vsel %vm743, %v609, %v935
        %v968 = vsel %vm744, %v611, %v936
        %v969 = vsel %vm745, %v613, %v937
        %v970 = vsel %vm746, %v615, %v938
        %v971 = vsel %vm747, %v617, %v939
        %v972 = vsel %vm748, %v619, %v940
        %v973 = vsel %vm620, 0, %v941
        %v974 = vsel %vm620, 0, %v942
        %v975 = vsel %vm620, 0, %v943
        %v976 = vsel %vm620, 0, %v944
        %v977 = vsel %vm620, 0, %v945
        %v978 = vsel %vm620, 0, %v946
        %v979 = vsel %vm620, 0, %v947
        %v980 = vsel %vm620, 0, %v948
        %v981 = vsel %vm620, 0, %v949
        %v982 = vsel %vm620, 0, %v950
        %v983 = vsel %vm620, 0, %v951
        %v984 = vsel %vm620, 0, %v952
        %v985 = vsel %vm620, 0, %v953
        %v986 = vsel %vm620, 0, %v954
        %v987 = vsel %vm620, 0, %v955
        %v988 = vsel %vm620, 0, %v956
        %v989 = vsel %vm620, 0, %v957
        %v990 = vsel %vm620, 0, %v958
        %v991 = vsel %vm620, 0, %v959
        %v992 = vsel %vm620, 0, %v960
        %v993 = vsel %vm620, 0, %v961
        %v994 = vsel %vm620, 0, %v962
        %v995 = vsel %vm620, 0, %v963
        %v996 = vsel %vm620, 0, %v964
        %v997 = vsel %vm620, 0, %v965
        %v998 = vsel %vm620, 0, %v966
        %v999 = vsel %vm620, 0, %v967
        %v1000 = vsel %vm620, 0, %v968
        %v1001 = vsel %vm620, 0, %v969
        %v1002 = vsel %vm620, 0, %v970
        %v1003 = vsel %vm620, 0, %v971
        %v1004 = vsel %vm620, 0, %v972
        %1005 = vst [vmem:[%s314] sm:$0xff] %v973
        %1006 = vst [vmem:[%s314 + $0x8] sm:$0xff] %v974
        %1007 = vst [vmem:[%s314 + $0x10] sm:$0xff] %v975
        %1008 = vst [vmem:[%s314 + $0x18] sm:$0xff] %v976
        %1009 = vst [vmem:[%s314 + $0x20] sm:$0xff] %v977
        %1010 = vst [vmem:[%s314 + $0x28] sm:$0xff] %v978
        %1011 = vst [vmem:[%s314 + $0x30] sm:$0xff] %v979
        %1012 = vst [vmem:[%s314 + $0x38] sm:$0xff] %v980
        %1013 = vst [vmem:[%s314 + $0x40] sm:$0xff] %v981
        %1014 = vst [vmem:[%s314 + $0x48] sm:$0xff] %v982
        %1015 = vst [vmem:[%s314 + $0x50] sm:$0xff] %v983
        %1016 = vst [vmem:[%s314 + $0x58] sm:$0xff] %v984
        %1017 = vst [vmem:[%s314 + $0x60] sm:$0xff] %v985
        %1018 = vst [vmem:[%s314 + $0x68] sm:$0xff] %v986
        %1019 = vst [vmem:[%s314 + $0x70] sm:$0xff] %v987
        %1020 = vst [vmem:[%s314 + $0x78] sm:$0xff] %v988
        %1021 = vst [vmem:[%s314 + $0x80] sm:$0xff] %v989
        %1022 = vst [vmem:[%s314 + $0x88] sm:$0xff] %v990
        %1023 = vst [vmem:[%s314 + $0x90] sm:$0xff] %v991
        %1024 = vst [vmem:[%s314 + $0x98] sm:$0xff] %v992
        %1025 = vst [vmem:[%s314 + $0xa0] sm:$0xff] %v993
        %1026 = vst [vmem:[%s314 + $0xa8] sm:$0xff] %v994
        %1027 = vst [vmem:[%s314 + $0xb0] sm:$0xff] %v995
        %1028 = vst [vmem:[%s314 + $0xb8] sm:$0xff] %v996
        %1029 = vst [vmem:[%s314 + $0xc0] sm:$0xff] %v997
        %1030 = vst [vmem:[%s314 + $0xc8] sm:$0xff] %v998
        %1031 = vst [vmem:[%s314 + $0xd0] sm:$0xff] %v999
        %1032 = vst [vmem:[%s314 + $0xd8] sm:$0xff] %v1000
        %1033 = vst [vmem:[%s314 + $0xe0] sm:$0xff] %v1001
        %1034 = vst [vmem:[%s314 + $0xe8] sm:$0xff] %v1002
        %1035 = vst [vmem:[%s314 + $0xf0] sm:$0xff] %v1003
        %1036 = vst [vmem:[%s314 + $0xf8] sm:$0xff] %v1004
        %s1037 = sand.u32 %s76, 1
        %s1038 = scalar_lea.sflag [#allocation4], %s1037
        %s1039 = sand.u32 %s76, 1
        %s1040 = smul.addr %s1039, 256
        %s1041 = scalar_lea.vmem [#allocation3], %s1040
        // Predicated region
        $region67: #{tpu_custom_call.1} parent=61 // pred_check
          %p1042 = pneg %p86
        $region68: #{tpu_custom_call.1} parent=61 // pred_check_branch
          %1044 = sbr.rel (%p1042) target = $region70
        $region69: #{tpu_custom_call.1} parent=61 // pred_region
          %s1045 = smul.u32 32, %s16
          %s1047 = ssub.s32 4096, 4096
          %1048 = vsyncadd %s1038, %s1047
          %s1049 = smul.addr %s1045, 128
          %s1050 = scalar_lea.hbm %s2, %s1049
          %s1051 = sshll.u32 %s1041, 4
          %s1052 = int_to_ptr.vmem [resolvable:$true] %s1051
          %1057 = dma.vmem_to_hbm [thread:$0]  %s1052, 4096, %s1050, %s1038, 128, 128, 8
        $region70: #{tpu_custom_call.1} parent=61 // pred_fallthru
          _
      $region62: #{tpu_custom_call.1} parent=5 // pred_fallthru
        _
      %p1058 = scmp.le.s32.totalorder 2, %s11
      // Predicated region
      $region71: #{tpu_custom_call.1} parent=5 // pred_check
        %p1059 = pneg %p1058
      $region72: #{tpu_custom_call.1} parent=5 // pred_check_branch
        %1061 = sbr.rel (%p1059) target = $region74
      $region73: #{tpu_custom_call.1} parent=5 // pred_region
        %s1062 = ssub.s32 %s11, 2
        // Predicated region
        $region75: #{tpu_custom_call.1} parent=73 // pred_check
          %p1063 = pneg %p92
        $region76: #{tpu_custom_call.1} parent=73 // pred_check_branch
          %1065 = sbr.rel (%p1063) target = $region78
        $region77: #{tpu_custom_call.1} parent=73 // pred_region
          %s1066 = sand.u32 %s77, 1
          %s1067 = scalar_lea.sflag [#allocation4], %s1066
          %s1068 = sand.u32 %s77, 1
          %s1069 = smul.addr %s1068, 256
          %s1070 = scalar_lea.vmem [#allocation3], %s1069
          %1071 = dma.done %s1067, 4096
        $region78: #{tpu_custom_call.1} parent=73 // pred_fallthru
          _
      $region74: #{tpu_custom_call.1} parent=5 // pred_fallthru
        _
    $region6: #{tpu_custom_call.1} parent=1 // loop_footer
      %s15 = sadd.s32 1, %s11
    $region7: #{tpu_custom_call.1} parent=1 // loop_footer_branch
      %10 = sbr.rel target = $region3
    $region8: #{tpu_custom_call.1} parent=1 // loop_exit
      _
    %1072 = vsyncpa [#allocation4], 1
    %s1073 = scalar_lea.sflag [#allocation4], 1
    %1074 = vsyncpa %s1073, 1

</llo_original>
